<compile_context>
chip_gen: v5e
topology: v5e:2x2
jax: 0.10.0
libtpu: 0.0.40
codegen_flags: <defaults>
</compile_context>

<pallas_src>
import functools

import jax
import jax.numpy as jnp
from jax.experimental import pallas as pl
from jax.experimental.pallas import tpu as pltpu

EPSILON = 1e-08
_LANES = 128
# Max 128-pixel groups (rows of the (C, S, 128) block) per grid step.
_MAX_BLOCK_GROUPS = 2048
# VMEM budget for the double-buffered input streams (2 inputs x 2 buffers).
_VMEM_INPUT_BUDGET = 12 * 1024 * 1024
# Scoped-VMEM limit handed to Mosaic: actual footprint + headroom, well under
# v7x's 64 MiB physical VMEM (don't request the whole chip).
_VMEM_LIMIT_BYTES = 40 * 1024 * 1024


def _dice_sums_kernel(x_ref, t_ref, out_ref, acc_i, acc_p, acc_t, *,
                      activation, hw, num_chunks, pixels_per_chunk,
                      sublane_fold):
    """One grid step: stream a pixel block and fold its per-class counts into
    tiny running VMEM accumulators (no full-tile accumulator traffic).

    x_ref, t_ref : (C, S, 128) or (C, N) logits / targets (native dtype)
    out_ref      : (C, 3) f32 [intersection, sum(pred), sum(target)] partials,
                   written once at the final chunk of this core's range
    acc_*        : small f32 VMEM running accumulators
    """
    chunk = pl.program_id(2)                     # chunk index within this core
    cpc = pl.num_programs(2)                     # chunks per core
    g = pl.program_id(0) * cpc + chunk           # global chunk index

    shape = x_ref.shape
    ndim = len(shape)
    C = shape[0]

    @pl.when(chunk == 0)
    def _():
        acc_i[...] = jnp.zeros_like(acc_i)
        acc_p[...] = jnp.zeros_like(acc_p)
        acc_t[...] = jnp.zeros_like(acc_t)

    x = x_ref[...]                               # native dtype, no upcast
    t = t_ref[...]

    tgt_b = t > 0
    if activation == "sigmoid":
        # sigmoid(x) > 0.5  <=>  x > 0 (monotone, strict at 0): no EUP exp.
        pred_b = x > 0
    elif activation == "softmax":
        xf = x.astype(jnp.float32)
        # NOTE: exp kept in f32 so results are stable on v5e (no bf16 EUP);
        # on v6e/v7x a bf16 exp would roughly double EUP throughput.
        m = jnp.max(xf, axis=0, keepdims=True)
        if C == 3:
            # softmax_c > 0.5 implies c is the strict argmax, and the argmax
            # wins iff exp(x_mid - m) + exp(x_min - m) < 1: 2 exps / pixel
            # instead of 3 (EUP is the binding unit on this path).
            mn = jnp.min(xf, axis=0, keepdims=True)
            mid = jnp.sum(xf, axis=0, keepdims=True) - m - mn
            conf = (jnp.exp(mid - m) + jnp.exp(mn - m)) < 1.0
            pred_b = (xf == m) & conf
        else:
            # General C: softmax_c > 0.5  <=>  x_c == m and sum(exp(x-m)) < 2.
            s = jnp.sum(jnp.exp(xf - m), axis=0, keepdims=True)
            pred_b = (xf == m) & (s < 2.0)
    else:
        pred_b = x > 0.5

    def fold(b):
        """Per-pixel bool counts -> the tiny accumulator shape."""
        f = b.astype(jnp.float32)
        if sublane_fold:                         # (C, S, 128), S % 8 == 0
            return jnp.sum(f.reshape(C, shape[1] // 8, 8, shape[2]), axis=1)
        if ndim == 3:                            # (C, S, L) -> (C, 1, 1)
            return jnp.sum(jnp.sum(f, axis=1, keepdims=True), axis=2,
                           keepdims=True)
        return jnp.sum(f, axis=1, keepdims=True)  # (C, N) -> (C, 1)

    def accumulate(p_b, t_b):
        acc_i[...] += fold(p_b & t_b)
        acc_p[...] += fold(p_b)
        acc_t[...] += fold(t_b)

    # Only the globally-last real chunk (edge block) and any clamped overflow
    # chunks need the validity mask; every other chunk takes the cheap path.
    needs_mask = g >= (num_chunks - 1)

    @pl.when(jnp.logical_not(needs_mask))
    def _():
        accumulate(pred_b, tgt_b)                # hot path: compare/sum only

    @pl.when(needs_mask)
    def _():
        if ndim == 3:
            S, L = shape[1], shape[2]
            row = jax.lax.broadcasted_iota(jnp.int32, (S, L), 0)
            lane = jax.lax.broadcasted_iota(jnp.int32, (S, L), 1)
            local = row * L + lane
        else:
            local = jax.lax.broadcasted_iota(jnp.int32, (1, shape[1]), 1)
        valid = (g * pixels_per_chunk + local) < hw
        accumulate(pred_b & valid, tgt_b & valid)

    @pl.when(chunk == cpc - 1)
    def _():
        # Per-(core, image) epilogue: one cross-lane reduction + one lane-3
        # store, kept out of the streaming loop.
        def final(a):
            r = a[...]
            while r.ndim > 2:
                r = jnp.sum(r, axis=-1)
            return jnp.sum(r, axis=1, keepdims=True)           # (C, 1)

        out_ref[...] = jnp.concatenate(
            [final(acc_i), final(acc_p), final(acc_t)], axis=1)


def _per_class_sums(inputs, targets, activation, class_start, class_count,
                    max_block_groups=None):
    """Streams (B, class_count, H*W) pixels once from HBM in their native
    dtype and returns per-class [intersection, sum(pred), sum(target)] counts
    as (class_count, 3) float32."""
    B, C_full, H, W = inputs.shape
    hw = H * W
    Ck = class_count
    assert class_start % Ck == 0
    cb = class_start // Ck                       # class block index
    in_bytes = inputs.dtype.itemsize + targets.dtype.itemsize
    if max_block_groups is None:
        max_block_groups = _MAX_BLOCK_GROUPS

    if hw % _LANES == 0:
        # Primary path: free view to (B, C, rows, 128) -> sublane/lane dense.
        rows = hw // _LANES
        x = inputs.reshape(B, C_full, rows, _LANES)
        t = targets.reshape(B, C_full, rows, _LANES)
        bytes_per_group = 2 * Ck * _LANES * in_bytes      # 2 = double buffer
        cap = max(8, min(max_block_groups,
                         _VMEM_INPUT_BUDGET // bytes_per_group) // 8 * 8)
        S = min(cap, rows)
        num_chunks = pl.cdiv(rows, S)
        pixels_per_chunk = S * _LANES
        sublane_fold = (S % 8 == 0)
        acc_shape = (Ck, 8, _LANES) if sublane_fold else (Ck, 1, 1)
        block = (None, Ck, S, _LANES)

        def make_in_map(cpc):
            def in_map(c, b, i):
                return (b, cb, jnp.minimum(c * cpc + i, num_chunks - 1), 0)
            return in_map
    else:
        # Fallback (H*W % 128 != 0): stream the *un-padded* flat pixel axis;
        # the in-kernel `flat < hw` mask covers the edge block.  No jnp.pad,
        # no extra HBM read+write pass of both tensors.
        x = inputs.reshape(B, C_full, hw)
        t = targets.reshape(B, C_full, hw)
        pad_ck = -(-Ck // 8) * 8                 # sublane padding of (Ck, N)
        bytes_per_group = 2 * pad_ck * _LANES * in_bytes
        cap = max(1, min(max_block_groups,
                         _VMEM_INPUT_BUDGET // bytes_per_group))
        total_groups = pl.cdiv(hw, _LANES)
        chunk_px = hw if total_groups <= cap else cap * _LANES
        num_chunks = pl.cdiv(hw, chunk_px)
        pixels_per_chunk = chunk_px
        sublane_fold = False
        acc_shape = (Ck, 1)
        block = (None, Ck, chunk_px)

        def make_in_map(cpc):
            def in_map(c, b, i):
                return (b, cb, jnp.minimum(c * cpc + i, num_chunks - 1))
            return in_map

    # Split the chunk range across a leading size-2 "parallel" axis when
    # B == 1 so both v7x TensorCores stream pixels (no-op on 1-TC chips).
    nc = 2 if (B == 1 and num_chunks >= 2) else 1
    cpc = pl.cdiv(num_chunks, nc)
    in_map = make_in_map(cpc)

    kernel = functools.partial(
        _dice_sums_kernel, activation=activation, hw=hw,
        num_chunks=num_chunks, pixels_per_chunk=pixels_per_chunk,
        sublane_fold=sublane_fold)

    sums = pl.pallas_call(
        kernel,
        out_shape=jax.ShapeDtypeStruct((nc, B, Ck, 3), jnp.float32),
        grid_spec=pltpu.PrefetchScalarGridSpec(
            num_scalar_prefetch=0,
            grid=(nc, B, cpc),
            in_specs=[pl.BlockSpec(block, in_map),
                      pl.BlockSpec(block, in_map)],
            out_specs=pl.BlockSpec((None, None, Ck, 3),
                                   lambda c, b, i: (c, b, 0, 0)),
            scratch_shapes=[pltpu.VMEM(acc_shape, jnp.float32)] * 3,
        ),
        compiler_params=pltpu.CompilerParams(
            dimension_semantics=("parallel", "parallel", "arbitrary"),
            vmem_limit_bytes=_VMEM_LIMIT_BYTES,
        ),
    )(x, t)
    # Tiny (core, batch) reduction of the partial counts in plain JAX.
    # Counts are f32 (exact below 2^24 px / image / class, same as torch).
    return jnp.sum(sums, axis=(0, 1))            # (Ck, 3)


def three_class_dice(inputs, targets, mode, activation=None, epsilon=EPSILON,
                     _max_block_groups=None):
    """JAX/Pallas port of ThreeClassDice.forward. Returns a scalar dice."""
    C = inputs.shape[1]
    if mode == "a":
        needed = slice(0, C)
    elif mode == "ne":
        needed = slice(0, 2)
    elif mode == "n":
        needed = slice(0, 1)
    elif mode == "e":
        needed = slice(1, 2)
    else:
        raise ValueError(f"unknown mode {mode!r}")

    if activation == "softmax":
        # softmax needs every class logit regardless of mode.
        cls0, ncls = 0, C
    else:
        # Only stream the classes the mode actually uses (HBM-bound kernel).
        cls0, ncls = needed.start, needed.stop - needed.start

    sums = _per_class_sums(inputs, targets, activation, cls0, ncls,
                           _max_block_groups)                 # (ncls, 3)
    inter, s_pred, s_tgt = sums[:, 0], sums[:, 1], sums[:, 2]
    dice = (2.0 * inter + epsilon) / (s_pred + s_tgt + epsilon)
    if activation == "softmax":
        dice = dice[needed]
    return jnp.mean(dice)


def _reference(inputs, targets, mode, activation=None, epsilon=EPSILON):
    """Pure-JAX mirror of the PyTorch forward (computed in float32)."""
    inputs = inputs.astype(jnp.float32)
    targets = targets.astype(jnp.float32)

    def class_dice(c):
        tgt = (targets[:, c, ...] > 0).astype(jnp.float32)
        if activation == "sigmoid":
            p = jax.nn.sigmoid(inputs[:, c, ...])
        elif activation == "softmax":
            p = jax.nn.softmax(inputs, axis=1)[:, c, ...]
        else:
            p = inputs[:, c, ...]
        pred = (p > 0.5).astype(jnp.float32)
        inter = jnp.sum(pred * tgt)
        union = jnp.sum(pred) + jnp.sum(tgt)
        return (2.0 * inter + epsilon) / (union + epsilon)

    C = inputs.shape[1]
    if mode == "a":
        return jnp.mean(jnp.stack([class_dice(c) for c in range(C)]))
    if mode == "ne":
        return jnp.mean(jnp.stack([class_dice(c) for c in range(2)]))
    if mode == "n":
        return class_dice(0)
    return class_dice(1)


if __name__ == "__main__":
    key = jax.random.PRNGKey(0)
    k1, k2, k3, k4 = jax.random.split(key, 4)

    failures = []

    def check(name, inputs, targets, mode, activation, **kw):
        out = jax.block_until_ready(
            three_class_dice(inputs, targets, mode, activation, **kw))
        ref = _reference(inputs, targets, mode, activation)
        if not jnp.allclose(out, ref, rtol=1e-5, atol=1e-6):
            failures.append(
                f"{name} mode={mode} act={activation}: {out} vs {ref}")

    # 1) Base case (B=2, C=3, 16x16): every mode x activation.
    x = jax.random.normal(k1, (2, 3, 16, 16), dtype=jnp.float32)
    t = jax.random.normal(k2, (2, 3, 16, 16), dtype=jnp.float32)
    for mode in ("a", "ne", "n", "e"):
        for act in (None, "sigmoid", "softmax"):
            check("base", x, t, mode, act)

    # 2) B=1 with several chunks (odd count): exercises the 2-way chunk split
    #    across the leading "parallel" axis plus the clamped overflow chunk.
    x1 = jax.random.normal(k3, (1, 3, 48, 48), dtype=jnp.float32)
    t1 = jax.random.normal(k4, (1, 3, 48, 48), dtype=jnp.float32)
    for act in (None, "sigmoid", "softmax"):
        check("split", x1, t1, "a", act, _max_block_groups=8)

    # 3) H*W not a multiple of 128: no-pad flat streaming (single edge block,
    #    and multi-chunk + core-split variant with the edge mask).
    x2 = jax.random.normal(k1, (2, 3, 24, 24), dtype=jnp.float32)
    t2 = jax.random.normal(k2, (2, 3, 24, 24), dtype=jnp.float32)
    for act in (None, "sigmoid", "softmax"):
        check("flat", x2, t2, "a", act)
    x3 = jax.random.normal(k3, (1, 3, 40, 40), dtype=jnp.float32)
    t3 = jax.random.normal(k4, (1, 3, 40, 40), dtype=jnp.float32)
    for act in (None, "sigmoid", "softmax"):
        check("flat-split", x3, t3, "ne", act, _max_block_groups=4)

    # 4) C != 3: general softmax branch.
    x4 = jax.random.normal(k1, (2, 4, 16, 16), dtype=jnp.float32)
    t4 = jax.random.normal(k2, (2, 4, 16, 16), dtype=jnp.float32)
    check("c4", x4, t4, "a", "softmax")

    # 5) bf16 logits + int8 targets streamed in native dtype (no upcast).
    xb = jax.random.normal(k3, (2, 3, 16, 16), dtype=jnp.float32).astype(
        jnp.bfloat16)
    tb = jax.random.randint(k4, (2, 3, 16, 16), -2, 3).astype(jnp.int8)
    for act in (None, "sigmoid", "softmax"):
        check("bf16-int8", xb, tb, "a", act)

    if failures:
        for f in failures:
            print("MISMATCH", f)
    else:
        print("KERNEL_OK")
</pallas_src>

<mosaic_0001>
module attributes {stable_mosaic.version = 11 : i64} {
  func.func @_dice_sums_kernel(%arg0: i32, %arg1: i32, %arg2: i32, %arg3: memref<1x3x2x128xf32, #tpu.memory_space<vmem>>, %arg4: memref<1x3x2x128xf32, #tpu.memory_space<vmem>>, %arg5: memref<1x1x3x3xf32, #tpu.memory_space<vmem>>, %arg6: memref<3x1x1xf32, #tpu.memory_space<vmem>>, %arg7: memref<3x1x1xf32, #tpu.memory_space<vmem>>, %arg8: memref<3x1x1xf32, #tpu.memory_space<vmem>>) attributes {dimension_semantics = [#tpu.dimension_semantics<parallel>, #tpu.dimension_semantics<parallel>, #tpu.dimension_semantics<arbitrary>], iteration_bounds = array<i64: 1, 2, 1>, scalar_prefetch = 0 : i64, scratch_operands = 3 : i64, tpu.core_type = #tpu.core_type<tc>, window_params = [{transform_indices = @transform_0, window_bounds = array<i64: 1, 3, 2, 128>}, {transform_indices = @transform_1, window_bounds = array<i64: 1, 3, 2, 128>}, {transform_indices = @transform_2, window_bounds = array<i64: 1, 1, 3, 3>}]} {
    %c1_i32 = arith.constant 1 : i32
    %0 = arith.muli %arg0, %c1_i32 : i32
    %1 = arith.addi %0, %arg2 : i32
    %c0_i32 = arith.constant 0 : i32
    %2 = arith.cmpi eq, %arg2, %c0_i32 : i32
    %3 = arith.extui %2 : i1 to i32
    %c0_i32_0 = arith.constant 0 : i32
    %4 = arith.cmpi ne, %3, %c0_i32_0 : i32
    scf.if %4 {
      %cst_14 = arith.constant 0.000000e+00 : f32
      %22 = vector.broadcast %cst_14 : f32 to vector<3x1x1xf32>
      %c0_15 = arith.constant 0 : index
      %c0_16 = arith.constant 0 : index
      %c0_17 = arith.constant 0 : index
      %23 = vector.load %arg6[%c0_15, %c0_16, %c0_17] : memref<3x1x1xf32, #tpu.memory_space<vmem>>, vector<3x1x1xf32>
      tpu.vector_store %arg6[%c0_15, %c0_16, %c0_17], %22 {strides = array<i32>} : memref<3x1x1xf32, #tpu.memory_space<vmem>>, vector<3x1x1xf32>,
      %cst_18 = arith.constant 0.000000e+00 : f32
      %24 = vector.broadcast %cst_18 : f32 to vector<3x1x1xf32>
      %c0_19 = arith.constant 0 : index
      %c0_20 = arith.constant 0 : index
      %c0_21 = arith.constant 0 : index
      %25 = vector.load %arg7[%c0_19, %c0_20, %c0_21] : memref<3x1x1xf32, #tpu.memory_space<vmem>>, vector<3x1x1xf32>
      tpu.vector_store %arg7[%c0_19, %c0_20, %c0_21], %24 {strides = array<i32>} : memref<3x1x1xf32, #tpu.memory_space<vmem>>, vector<3x1x1xf32>,
      %cst_22 = arith.constant 0.000000e+00 : f32
      %26 = vector.broadcast %cst_22 : f32 to vector<3x1x1xf32>
      %c0_23 = arith.constant 0 : index
      %c0_24 = arith.constant 0 : index
      %c0_25 = arith.constant 0 : index
      %27 = vector.load %arg8[%c0_23, %c0_24, %c0_25] : memref<3x1x1xf32, #tpu.memory_space<vmem>>, vector<3x1x1xf32>
      tpu.vector_store %arg8[%c0_23, %c0_24, %c0_25], %26 {strides = array<i32>} : memref<3x1x1xf32, #tpu.memory_space<vmem>>, vector<3x1x1xf32>,
    } else {
    }
    %c0 = arith.constant 0 : index
    %c0_1 = arith.constant 0 : index
    %c0_2 = arith.constant 0 : index
    %c0_3 = arith.constant 0 : index
    %5 = vector.load %arg3[%c0, %c0_1, %c0_2, %c0_3] : memref<1x3x2x128xf32, #tpu.memory_space<vmem>>, vector<1x3x2x128xf32>
    %6 = vector.shape_cast %5 : vector<1x3x2x128xf32> to vector<3x2x128xf32>
    %c0_4 = arith.constant 0 : index
    %c0_5 = arith.constant 0 : index
    %c0_6 = arith.constant 0 : index
    %c0_7 = arith.constant 0 : index
    %7 = vector.load %arg4[%c0_4, %c0_5, %c0_6, %c0_7] : memref<1x3x2x128xf32, #tpu.memory_space<vmem>>, vector<1x3x2x128xf32>
    %8 = vector.shape_cast %7 : vector<1x3x2x128xf32> to vector<3x2x128xf32>
    %cst = arith.constant 0.000000e+00 : f32
    %9 = vector.broadcast %cst : f32 to vector<3x2x128xf32>
    %10 = arith.cmpf ogt, %8, %9 : vector<3x2x128xf32>
    %cst_8 = arith.constant 5.000000e-01 : f32
    %11 = vector.broadcast %cst_8 : f32 to vector<3x2x128xf32>
    %12 = arith.cmpf ogt, %6, %11 : vector<3x2x128xf32>
    %c0_i32_9 = arith.constant 0 : i32
    %13 = arith.cmpi sge, %1, %c0_i32_9 : i32
    %true = arith.constant true
    %14 = arith.xori %13, %true : i1
    %15 = arith.extui %14 : i1 to i32
    %c0_i32_10 = arith.constant 0 : i32
    %16 = arith.cmpi ne, %15, %c0_i32_10 : i32
    scf.if %16 {
      %c0_14 = arith.constant 0 : index
      %c0_15 = arith.constant 0 : index
      %c0_16 = arith.constant 0 : index
      %22 = vector.load %arg6[%c0_14, %c0_15, %c0_16] : memref<3x1x1xf32, #tpu.memory_space<vmem>>, vector<3x1x1xf32>
      %23 = arith.andi %12, %10 : vector<3x2x128xi1>
      %24 = arith.extui %23 : vector<3x2x128xi1> to vector<3x2x128xi32>
      %25 = arith.sitofp %24 : vector<3x2x128xi32> to vector<3x2x128xf32>
      %cst_17 = arith.constant dense<0.000000e+00> : vector<3x128xf32>
      %26 = vector.multi_reduction <add>, %25, %cst_17 [1] : vector<3x2x128xf32> to vector<3x128xf32>
      %27 = vector.shape_cast %26 : vector<3x128xf32> to vector<3x1x128xf32>
      %cst_18 = arith.constant dense<0.000000e+00> : vector<3x1xf32>
      %28 = vector.multi_reduction <add>, %27, %cst_18 [2] : vector<3x1x128xf32> to vector<3x1xf32>
      %29 = vector.shape_cast %28 : vector<3x1xf32> to vector<3x1x1xf32>
      %30 = arith.addf %22, %29 : vector<3x1x1xf32>
      %c0_19 = arith.constant 0 : index
      %c0_20 = arith.constant 0 : index
      %c0_21 = arith.constant 0 : index
      %31 = vector.load %arg6[%c0_19, %c0_20, %c0_21] : memref<3x1x1xf32, #tpu.memory_space<vmem>>, vector<3x1x1xf32>
      tpu.vector_store %arg6[%c0_19, %c0_20, %c0_21], %30 {strides = array<i32>} : memref<3x1x1xf32, #tpu.memory_space<vmem>>, vector<3x1x1xf32>,
      %c0_22 = arith.constant 0 : index
      %c0_23 = arith.constant 0 : index
      %c0_24 = arith.constant 0 : index
      %32 = vector.load %arg7[%c0_22, %c0_23, %c0_24] : memref<3x1x1xf32, #tpu.memory_space<vmem>>, vector<3x1x1xf32>
      %33 = arith.extui %12 : vector<3x2x128xi1> to vector<3x2x128xi32>
      %34 = arith.sitofp %33 : vector<3x2x128xi32> to vector<3x2x128xf32>
      %cst_25 = arith.constant dense<0.000000e+00> : vector<3x128xf32>
      %35 = vector.multi_reduction <add>, %34, %cst_25 [1] : vector<3x2x128xf32> to vector<3x128xf32>
      %36 = vector.shape_cast %35 : vector<3x128xf32> to vector<3x1x128xf32>
      %cst_26 = arith.constant dense<0.000000e+00> : vector<3x1xf32>
      %37 = vector.multi_reduction <add>, %36, %cst_26 [2] : vector<3x1x128xf32> to vector<3x1xf32>
      %38 = vector.shape_cast %37 : vector<3x1xf32> to vector<3x1x1xf32>
      %39 = arith.addf %32, %38 : vector<3x1x1xf32>
      %c0_27 = arith.constant 0 : index
      %c0_28 = arith.constant 0 : index
      %c0_29 = arith.constant 0 : index
      %40 = vector.load %arg7[%c0_27, %c0_28, %c0_29] : memref<3x1x1xf32, #tpu.memory_space<vmem>>, vector<3x1x1xf32>
      tpu.vector_store %arg7[%c0_27, %c0_28, %c0_29], %39 {strides = array<i32>} : memref<3x1x1xf32, #tpu.memory_space<vmem>>, vector<3x1x1xf32>,
      %c0_30 = arith.constant 0 : index
      %c0_31 = arith.constant 0 : index
      %c0_32 = arith.constant 0 : index
      %41 = vector.load %arg8[%c0_30, %c0_31, %c0_32] : memref<3x1x1xf32, #tpu.memory_space<vmem>>, vector<3x1x1xf32>
      %42 = arith.extui %10 : vector<3x2x128xi1> to vector<3x2x128xi32>
      %43 = arith.sitofp %42 : vector<3x2x128xi32> to vector<3x2x128xf32>
      %cst_33 = arith.constant dense<0.000000e+00> : vector<3x128xf32>
      %44 = vector.multi_reduction <add>, %43, %cst_33 [1] : vector<3x2x128xf32> to vector<3x128xf32>
      %45 = vector.shape_cast %44 : vector<3x128xf32> to vector<3x1x128xf32>
      %cst_34 = arith.constant dense<0.000000e+00> : vector<3x1xf32>
      %46 = vector.multi_reduction <add>, %45, %cst_34 [2] : vector<3x1x128xf32> to vector<3x1xf32>
      %47 = vector.shape_cast %46 : vector<3x1xf32> to vector<3x1x1xf32>
      %48 = arith.addf %41, %47 : vector<3x1x1xf32>
      %c0_35 = arith.constant 0 : index
      %c0_36 = arith.constant 0 : index
      %c0_37 = arith.constant 0 : index
      %49 = vector.load %arg8[%c0_35, %c0_36, %c0_37] : memref<3x1x1xf32, #tpu.memory_space<vmem>>, vector<3x1x1xf32>
      tpu.vector_store %arg8[%c0_35, %c0_36, %c0_37], %48 {strides = array<i32>} : memref<3x1x1xf32, #tpu.memory_space<vmem>>, vector<3x1x1xf32>,
    } else {
    }
    %17 = arith.extui %13 : i1 to i32
    %c0_i32_11 = arith.constant 0 : i32
    %18 = arith.cmpi ne, %17, %c0_i32_11 : i32
    scf.if %18 {
      %22 = tpu.iota {dimensions = array<i32: 0>} : vector<2x128xi32>
      %23 = tpu.iota {dimensions = array<i32: 1>} : vector<2x128xi32>
      %c128_i32 = arith.constant 128 : i32
      %24 = vector.broadcast %c128_i32 : i32 to vector<2x128xi32>
      %25 = arith.muli %22, %24 : vector<2x128xi32>
      %26 = arith.addi %25, %23 : vector<2x128xi32>
      %c256_i32 = arith.constant 256 : i32
      %27 = arith.muli %1, %c256_i32 : i32
      %28 = vector.broadcast %27 : i32 to vector<2x128xi32>
      %29 = arith.addi %28, %26 : vector<2x128xi32>
      %c256_i32_14 = arith.constant 256 : i32
      %30 = vector.broadcast %c256_i32_14 : i32 to vector<2x128xi32>
      %31 = arith.cmpi slt, %29, %30 : vector<2x128xi32>
      %32 = vector.shape_cast %31 : vector<2x128xi1> to vector<1x2x128xi1>
      %33 = vector.broadcast %32 : vector<1x2x128xi1> to vector<3x2x128xi1>
      %34 = arith.andi %12, %33 : vector<3x2x128xi1>
      %35 = vector.shape_cast %31 : vector<2x128xi1> to vector<1x2x128xi1>
      %36 = vector.broadcast %35 : vector<1x2x128xi1> to vector<3x2x128xi1>
      %37 = arith.andi %10, %36 : vector<3x2x128xi1>
      %c0_15 = arith.constant 0 : index
      %c0_16 = arith.constant 0 : index
      %c0_17 = arith.constant 0 : index
      %38 = vector.load %arg6[%c0_15, %c0_16, %c0_17] : memref<3x1x1xf32, #tpu.memory_space<vmem>>, vector<3x1x1xf32>
      %39 = arith.andi %34, %37 : vector<3x2x128xi1>
      %40 = arith.extui %39 : vector<3x2x128xi1> to vector<3x2x128xi32>
      %41 = arith.sitofp %40 : vector<3x2x128xi32> to vector<3x2x128xf32>
      %cst_18 = arith.constant dense<0.000000e+00> : vector<3x128xf32>
      %42 = vector.multi_reduction <add>, %41, %cst_18 [1] : vector<3x2x128xf32> to vector<3x128xf32>
      %43 = vector.shape_cast %42 : vector<3x128xf32> to vector<3x1x128xf32>
      %cst_19 = arith.constant dense<0.000000e+00> : vector<3x1xf32>
      %44 = vector.multi_reduction <add>, %43, %cst_19 [2] : vector<3x1x128xf32> to vector<3x1xf32>
      %45 = vector.shape_cast %44 : vector<3x1xf32> to vector<3x1x1xf32>
      %46 = arith.addf %38, %45 : vector<3x1x1xf32>
      %c0_20 = arith.constant 0 : index
      %c0_21 = arith.constant 0 : index
      %c0_22 = arith.constant 0 : index
      %47 = vector.load %arg6[%c0_20, %c0_21, %c0_22] : memref<3x1x1xf32, #tpu.memory_space<vmem>>, vector<3x1x1xf32>
      tpu.vector_store %arg6[%c0_20, %c0_21, %c0_22], %46 {strides = array<i32>} : memref<3x1x1xf32, #tpu.memory_space<vmem>>, vector<3x1x1xf32>,
      %c0_23 = arith.constant 0 : index
      %c0_24 = arith.constant 0 : index
      %c0_25 = arith.constant 0 : index
      %48 = vector.load %arg7[%c0_23, %c0_24, %c0_25] : memref<3x1x1xf32, #tpu.memory_space<vmem>>, vector<3x1x1xf32>
      %49 = arith.extui %34 : vector<3x2x128xi1> to vector<3x2x128xi32>
      %50 = arith.sitofp %49 : vector<3x2x128xi32> to vector<3x2x128xf32>
      %cst_26 = arith.constant dense<0.000000e+00> : vector<3x128xf32>
      %51 = vector.multi_reduction <add>, %50, %cst_26 [1] : vector<3x2x128xf32> to vector<3x128xf32>
      %52 = vector.shape_cast %51 : vector<3x128xf32> to vector<3x1x128xf32>
      %cst_27 = arith.constant dense<0.000000e+00> : vector<3x1xf32>
      %53 = vector.multi_reduction <add>, %52, %cst_27 [2] : vector<3x1x128xf32> to vector<3x1xf32>
      %54 = vector.shape_cast %53 : vector<3x1xf32> to vector<3x1x1xf32>
      %55 = arith.addf %48, %54 : vector<3x1x1xf32>
      %c0_28 = arith.constant 0 : index
      %c0_29 = arith.constant 0 : index
      %c0_30 = arith.constant 0 : index
      %56 = vector.load %arg7[%c0_28, %c0_29, %c0_30] : memref<3x1x1xf32, #tpu.memory_space<vmem>>, vector<3x1x1xf32>
      tpu.vector_store %arg7[%c0_28, %c0_29, %c0_30], %55 {strides = array<i32>} : memref<3x1x1xf32, #tpu.memory_space<vmem>>, vector<3x1x1xf32>,
      %c0_31 = arith.constant 0 : index
      %c0_32 = arith.constant 0 : index
      %c0_33 = arith.constant 0 : index
      %57 = vector.load %arg8[%c0_31, %c0_32, %c0_33] : memref<3x1x1xf32, #tpu.memory_space<vmem>>, vector<3x1x1xf32>
      %58 = arith.extui %37 : vector<3x2x128xi1> to vector<3x2x128xi32>
      %59 = arith.sitofp %58 : vector<3x2x128xi32> to vector<3x2x128xf32>
      %cst_34 = arith.constant dense<0.000000e+00> : vector<3x128xf32>
      %60 = vector.multi_reduction <add>, %59, %cst_34 [1] : vector<3x2x128xf32> to vector<3x128xf32>
      %61 = vector.shape_cast %60 : vector<3x128xf32> to vector<3x1x128xf32>
      %cst_35 = arith.constant dense<0.000000e+00> : vector<3x1xf32>
      %62 = vector.multi_reduction <add>, %61, %cst_35 [2] : vector<3x1x128xf32> to vector<3x1xf32>
      %63 = vector.shape_cast %62 : vector<3x1xf32> to vector<3x1x1xf32>
      %64 = arith.addf %57, %63 : vector<3x1x1xf32>
      %c0_36 = arith.constant 0 : index
      %c0_37 = arith.constant 0 : index
      %c0_38 = arith.constant 0 : index
      %65 = vector.load %arg8[%c0_36, %c0_37, %c0_38] : memref<3x1x1xf32, #tpu.memory_space<vmem>>, vector<3x1x1xf32>
      tpu.vector_store %arg8[%c0_36, %c0_37, %c0_38], %64 {strides = array<i32>} : memref<3x1x1xf32, #tpu.memory_space<vmem>>, vector<3x1x1xf32>,
    } else {
    }
    %c0_i32_12 = arith.constant 0 : i32
    %19 = arith.cmpi eq, %arg2, %c0_i32_12 : i32
    %20 = arith.extui %19 : i1 to i32
    %c0_i32_13 = arith.constant 0 : i32
    %21 = arith.cmpi ne, %20, %c0_i32_13 : i32
    scf.if %21 {
      %c0_14 = arith.constant 0 : index
      %c0_15 = arith.constant 0 : index
      %c0_16 = arith.constant 0 : index
      %22 = vector.load %arg6[%c0_14, %c0_15, %c0_16] : memref<3x1x1xf32, #tpu.memory_space<vmem>>, vector<3x1x1xf32>
      %cst_17 = arith.constant dense<0.000000e+00> : vector<3x1xf32>
      %23 = vector.multi_reduction <add>, %22, %cst_17 [2] : vector<3x1x1xf32> to vector<3x1xf32>
      %cst_18 = arith.constant dense<0.000000e+00> : vector<3xf32>
      %24 = vector.multi_reduction <add>, %23, %cst_18 [1] : vector<3x1xf32> to vector<3xf32>
      %25 = vector.shape_cast %24 : vector<3xf32> to vector<3x1xf32>
      %c0_19 = arith.constant 0 : index
      %c0_20 = arith.constant 0 : index
      %c0_21 = arith.constant 0 : index
      %26 = vector.load %arg7[%c0_19, %c0_20, %c0_21] : memref<3x1x1xf32, #tpu.memory_space<vmem>>, vector<3x1x1xf32>
      %cst_22 = arith.constant dense<0.000000e+00> : vector<3x1xf32>
      %27 = vector.multi_reduction <add>, %26, %cst_22 [2] : vector<3x1x1xf32> to vector<3x1xf32>
      %cst_23 = arith.constant dense<0.000000e+00> : vector<3xf32>
      %28 = vector.multi_reduction <add>, %27, %cst_23 [1] : vector<3x1xf32> to vector<3xf32>
      %29 = vector.shape_cast %28 : vector<3xf32> to vector<3x1xf32>
      %c0_24 = arith.constant 0 : index
      %c0_25 = arith.constant 0 : index
      %c0_26 = arith.constant 0 : index
      %30 = vector.load %arg8[%c0_24, %c0_25, %c0_26] : memref<3x1x1xf32, #tpu.memory_space<vmem>>, vector<3x1x1xf32>
      %cst_27 = arith.constant dense<0.000000e+00> : vector<3x1xf32>
      %31 = vector.multi_reduction <add>, %30, %cst_27 [2] : vector<3x1x1xf32> to vector<3x1xf32>
      %cst_28 = arith.constant dense<0.000000e+00> : vector<3xf32>
      %32 = vector.multi_reduction <add>, %31, %cst_28 [1] : vector<3x1xf32> to vector<3xf32>
      %33 = vector.shape_cast %32 : vector<3xf32> to vector<3x1xf32>
      %34 = tpu.concatenate %25, %29, %33 in 1 : vector<3x1xf32>, vector<3x1xf32>, vector<3x1xf32> -> vector<3x3xf32>
      %c0_29 = arith.constant 0 : index
      %c0_30 = arith.constant 0 : index
      %c0_31 = arith.constant 0 : index
      %c0_32 = arith.constant 0 : index
      %35 = vector.load %arg5[%c0_29, %c0_30, %c0_31, %c0_32] : memref<1x1x3x3xf32, #tpu.memory_space<vmem>>, vector<1x1x3x3xf32>
      %36 = vector.shape_cast %35 : vector<1x1x3x3xf32> to vector<3x3xf32>
      %37 = vector.shape_cast %34 : vector<3x3xf32> to vector<1x1x3x3xf32>
      tpu.vector_store %arg5[%c0_29, %c0_30, %c0_31, %c0_32], %37 {strides = array<i32>} : memref<1x1x3x3xf32, #tpu.memory_space<vmem>>, vector<1x1x3x3xf32>,
    } else {
    }
    return
  }
  func.func @transform_0(%arg0: i32, %arg1: i32, %arg2: i32) -> (i32, i32, i32, i32) {
    %c1_i32 = arith.constant 1 : i32
    %0 = arith.muli %arg0, %c1_i32 : i32
    %1 = arith.addi %0, %arg2 : i32
    %c0_i32 = arith.constant 0 : i32
    %2 = arith.minsi %1, %c0_i32 : i32
    %c0_i32_0 = arith.constant 0 : i32
    %c0_i32_1 = arith.constant 0 : i32
    %c0_i32_2 = arith.constant 0 : i32
    return %arg1, %c0_i32_0, %2, %c0_i32_1 : i32, i32, i32, i32
  }
  func.func @transform_1(%arg0: i32, %arg1: i32, %arg2: i32) -> (i32, i32, i32, i32) {
    %c1_i32 = arith.constant 1 : i32
    %0 = arith.muli %arg0, %c1_i32 : i32
    %1 = arith.addi %0, %arg2 : i32
    %c0_i32 = arith.constant 0 : i32
    %2 = arith.minsi %1, %c0_i32 : i32
    %c0_i32_0 = arith.constant 0 : i32
    %c0_i32_1 = arith.constant 0 : i32
    %c0_i32_2 = arith.constant 0 : i32
    return %arg1, %c0_i32_0, %2, %c0_i32_1 : i32, i32, i32, i32
  }
  func.func @transform_2(%arg0: i32, %arg1: i32, %arg2: i32) -> (i32, i32, i32, i32) {
    %c0_i32 = arith.constant 0 : i32
    %c0_i32_0 = arith.constant 0 : i32
    %c0_i32_1 = arith.constant 0 : i32
    return %arg0, %arg1, %c0_i32, %c0_i32_0 : i32, i32, i32, i32
  }
}

</mosaic_0001>

<llo_original>
// kernel: tpu_custom_call.1
$region0: #{tpu_custom_call.1}
  #allocation0 [shape = 'u32[]', space=smem, size = 0x4, offset = 0x4, fixed_abs, tag = 'smem constant byte address 0x4 - core index']
  #allocation1 [shape = 'u32[72,128]{1,0:T(1,128)}', space=vmem, size = 0x9000, scoped, tag = 'internal scratch']
  #allocation2 [shape = 'f32[3,1,1]{2,1,0:T(1,128)}', space=vmem, size = 0x600, scoped, tag = 'scratch operand']
  #allocation3 [shape = 'f32[3,1,1]{2,1,0:T(1,128)}', space=vmem, size = 0x600, scoped, tag = 'scratch operand']
  #allocation4 [shape = 'f32[3,1,1]{2,1,0:T(1,128)}', space=vmem, size = 0x600, scoped, tag = 'scratch operand']
  %s0 = inlined_call_operand.hbm [shape: f32[2,3,2,128], index: 0, kind: input, shape index: {}]
  %s1 = inlined_call_operand.hbm [shape: f32[2,3,2,128], index: 1, kind: input, shape index: {}]
  %s2 = inlined_call_operand.vmem [shape: f32[1,2,3,3], index: 2, kind: output, shape index: {}]
  %s3 = sld [smem:[#allocation0]]
  $region65: #{tpu_custom_call.1} parent=0
    _
  %s5 = ssub.s32 1, %s3
  %s6 = scalar_select 0, %s5, %s3
  $region1: #{tpu_custom_call.1} parent=0
    #allocation5 [shape = 'u8[6144]{0}', space=vmem, size = 0x1800, scoped, tag = 'input window, operand 0']
    #allocation6 [shape = 's32[2]{0}', space=sflag, size = 0x8, scoped, tag = 'scoped memory for tpu_custom_call.1']
    #allocation7 [shape = 'u8[6144]{0}', space=vmem, size = 0x1800, scoped, tag = 'input window, operand 1']
    #allocation8 [shape = 's32[2]{0}', space=sflag, size = 0x8, scoped, tag = 'scoped memory for tpu_custom_call.1']
    %7 = vsyncpa [#allocation6], 0
    %s8 = scalar_lea.sflag [#allocation6], 1
    %9 = vsyncpa %s8, 0
    %10 = vsyncpa [#allocation8], 0
    %s11 = scalar_lea.sflag [#allocation8], 1
    %12 = vsyncpa %s11, 0
    loop: start=0, step=1, limit=4
    $region2: #{tpu_custom_call.1} parent=1 // loop_pre_header
      _
    $region3: #{tpu_custom_call.1} parent=1 // loop_header
      %s14 = sphi 0, %s18
      %p15 = scmp.ge.s32.totalorder %s14, 4
      %s21 = sphi 0, %s40
      %s22 = sphi 0, %s36
      %s23 = sphi 0, %s32
      %s24 = sphi 0, %s21
      %s25 = sphi 0, %s22
      %s26 = sphi 0, %s23
      %s27 = sphi 0, %s24
      %s28 = sphi 0, %s25
      %s29 = sphi 0, %s26
      %s51 = sphi 0, %s53
      %s54 = sphi 0, %s51
      %s55 = sphi 0, %s54
      %s71 = sphi 0, %s55
      %s85 = sphi 0, %s87
      %s88 = sphi 0, %s85
      %s89 = sphi 0, %s88
      %s105 = sphi 0, %s89
      %s113 = sphi 0, %s115
      %s116 = sphi 0, %s113
      %s117 = sphi 0, %s116
      %s133 = sphi 0, %s117
    $region4: #{tpu_custom_call.1} parent=1 // loop_header_branch
      %17 = sbr.rel (%p15) target = $region8
    $region5: #{tpu_custom_call.1} parent=1 // loop_body
      %s19 = ssub.s32 %s14, 1
      %s20 = ssub.s32 %s14, 2
      %s30 = sadd.s32 1, %s23
      %p31 = scmp.ge.s32.totalorder %s30, 1
      %s32 = scalar_select %p31, 0, %s30
      %s33 = sadd.s32 1, %s22
      %s34 = scalar_select %p31, %s33, %s22
      %p35 = scmp.ge.s32.totalorder %s34, 2
      %s36 = scalar_select %p35, 0, %s34
      %s37 = sadd.s32 1, %s21
      %s38 = scalar_select %p35, %s37, %s21
      %p39 = scmp.ge.s32.totalorder %s38, 1
      %s40 = scalar_select %p39, 0, %s38
      %s41 = sadd.s32 %s21, %s23
      %p42 = scmp.lt.s32.totalorder %s41, 0
      %s43 = scalar_select %p42, %s41, 0
      %s44 = sadd.s32 %s40, %s32
      %p45 = scmp.lt.s32.totalorder %s44, 0
      %s46 = scalar_select %p45, %s44, 0
      %s47 = ssub.s32 %s22, %s36
      %s48 = ssub.s32 %s43, %s46
      %s49 = sor.u32 %s47, %s48
      %p50 = scmp.eq.s32.totalorder %s49, 0
      %s52 = sadd.s32 %s51, 1
      %s53 = scalar_select %p50, %s51, %s52
      %p56 = pneg %p50
      %p57 = scmp.eq.s32.totalorder %s14, 1
      %p58 = por %p56, %p57
      %p59 = scmp.ne.s32.totalorder %s51, %s54
      %p60 = scmp.eq.s32.totalorder %s14, 0
      %p61 = por %p59, %p60
      %p62 = scmp.ne.s32.totalorder %s51, %s54
      %p63 = scmp.eq.s32.totalorder %s19, 1
      %p64 = por %p62, %p63
      %p65 = scmp.ne.s32.totalorder %s54, %s55
      %p66 = scmp.eq.s32.totalorder %s19, 0
      %p67 = por %p65, %p66
      %p68 = scmp.ne.s32.totalorder %s54, %s55
      %p69 = scmp.eq.s32.totalorder %s20, 1
      %p70 = por %p68, %p69
      %p72 = scmp.ne.s32.totalorder %s55, %s71
      %p73 = scmp.eq.s32.totalorder %s20, 0
      %p74 = por %p72, %p73
      %s75 = sadd.s32 %s21, %s23
      %p76 = scmp.lt.s32.totalorder %s75, 0
      %s77 = scalar_select %p76, %s75, 0
      %s78 = sadd.s32 %s40, %s32
      %p79 = scmp.lt.s32.totalorder %s78, 0
      %s80 = scalar_select %p79, %s78, 0
      %s81 = ssub.s32 %s22, %s36
      %s82 = ssub.s32 %s77, %s80
      %s83 = sor.u32 %s81, %s82
      %p84 = scmp.eq.s32.totalorder %s83, 0
      %s86 = sadd.s32 %s85, 1
      %s87 = scalar_select %p84, %s85, %s86
      %p90 = pneg %p84
      %p91 = scmp.eq.s32.totalorder %s14, 1
      %p92 = por %p90, %p91
      %p93 = scmp.ne.s32.totalorder %s85, %s88
      %p94 = scmp.eq.s32.totalorder %s14, 0
      %p95 = por %p93, %p94
      %p96 = scmp.ne.s32.totalorder %s85, %s88
      %p97 = scmp.eq.s32.totalorder %s19, 1
      %p98 = por %p96, %p97
      %p99 = scmp.ne.s32.totalorder %s88, %s89
      %p100 = scmp.eq.s32.totalorder %s19, 0
      %p101 = por %p99, %p100
      %p102 = scmp.ne.s32.totalorder %s88, %s89
      %p103 = scmp.eq.s32.totalorder %s20, 1
      %p104 = por %p102, %p103
      %p106 = scmp.ne.s32.totalorder %s89, %s105
      %p107 = scmp.eq.s32.totalorder %s20, 0
      %p108 = por %p106, %p107
      %s109 = ssub.s32 %s21, %s40
      %s110 = ssub.s32 %s22, %s36
      %s111 = sor.u32 %s109, %s110
      %p112 = scmp.eq.s32.totalorder %s111, 0
      %s114 = sadd.s32 %s113, 1
      %s115 = scalar_select %p112, %s113, %s114
      %p118 = pneg %p112
      %p119 = scmp.eq.s32.totalorder %s14, 1
      %p120 = por %p118, %p119
      %p121 = scmp.ne.s32.totalorder %s113, %s116
      %p122 = scmp.eq.s32.totalorder %s14, 0
      %p123 = por %p121, %p122
      %p124 = scmp.ne.s32.totalorder %s113, %s116
      %p125 = scmp.eq.s32.totalorder %s19, 1
      %p126 = por %p124, %p125
      %p127 = scmp.ne.s32.totalorder %s116, %s117
      %p128 = scmp.eq.s32.totalorder %s19, 0
      %p129 = por %p127, %p128
      %p130 = scmp.ne.s32.totalorder %s116, %s117
      %p131 = scmp.eq.s32.totalorder %s20, 1
      %p132 = por %p130, %p131
      %p134 = scmp.ne.s32.totalorder %s117, %s133
      %p135 = scmp.eq.s32.totalorder %s20, 0
      %p136 = por %p134, %p135
      %p137 = scmp.le.s32.totalorder 1, %s14
      %p138 = scmp.lt.s32.totalorder %s14, 3
      %p139 = pnand %p137, %p138
      %p140 = pneg %p139
      // Predicated region
      $region9: #{tpu_custom_call.1} parent=5 // pred_check
        _
      $region10: #{tpu_custom_call.1} parent=5 // pred_check_branch
        %142 = sbr.rel (%p139) target = $region12
      $region11: #{tpu_custom_call.1} parent=5 // pred_region
        %s143 = ssub.s32 %s14, 1
      $region12: #{tpu_custom_call.1} parent=5 // pred_fallthru
        _
      %p144 = scmp.lt.s32.totalorder %s14, 2
      // Predicated region
      $region13: #{tpu_custom_call.1} parent=5 // pred_check
        %p145 = pneg %p144
      $region14: #{tpu_custom_call.1} parent=5 // pred_check_branch
        %147 = sbr.rel (%p145) target = $region16
      $region15: #{tpu_custom_call.1} parent=5 // pred_region
        // Predicated region
        $region17: #{tpu_custom_call.1} parent=15 // pred_check
          %p148 = pneg %p61
        $region18: #{tpu_custom_call.1} parent=15 // pred_check_branch
          %150 = sbr.rel (%p148) target = $region20
        $region19: #{tpu_custom_call.1} parent=15 // pred_region
          %s151 = sand.u32 %s51, 1
          %s152 = scalar_lea.sflag [#allocation6], %s151
          %s153 = sand.u32 %s51, 1
          %s154 = smul.addr %s153, 6
          %s155 = scalar_lea.vmem [#allocation5], %s154
          %s156 = sadd.s32 %s21, %s23
          %p157 = scmp.lt.s32.totalorder %s156, 0
          %s158 = scalar_select %p157, %s156, 0
          %160 = vsyncadd %s152, 0
          %s161 = smul.addr %s22, 3
          %s162 = sadd.s32 %s158, %s161
          %s163 = smul.addr %s162, 2
          %s164 = scalar_lea.hbm %s0, %s163
          %s165 = sshll.u32 %s164, 4
          %s166 = int_to_ptr.hbm [resolvable:$true] %s165
          %s167 = sshll.u32 %s155, 4
          %s168 = int_to_ptr.vmem [resolvable:$true] %s167
          %173 = dma.hbm_to_vmem [thread:$0]  %s166, 96, %s168, %s152, 32, 32, 2
        $region20: #{tpu_custom_call.1} parent=15 // pred_fallthru
          _
        // Predicated region
        $region21: #{tpu_custom_call.1} parent=15 // pred_check
          %p174 = pneg %p95
        $region22: #{tpu_custom_call.1} parent=15 // pred_check_branch
          %176 = sbr.rel (%p174) target = $region24
        $region23: #{tpu_custom_call.1} parent=15 // pred_region
          %s177 = sand.u32 %s85, 1
          %s178 = scalar_lea.sflag [#allocation8], %s177
          %s179 = sand.u32 %s85, 1
          %s180 = smul.addr %s179, 6
          %s181 = scalar_lea.vmem [#allocation7], %s180
          %s182 = sadd.s32 %s21, %s23
          %p183 = scmp.lt.s32.totalorder %s182, 0
          %s184 = scalar_select %p183, %s182, 0
          %186 = vsyncadd %s178, 0
          %s187 = smul.addr %s22, 3
          %s188 = sadd.s32 %s184, %s187
          %s189 = smul.addr %s188, 2
          %s190 = scalar_lea.hbm %s1, %s189
          %s191 = sshll.u32 %s190, 4
          %s192 = int_to_ptr.hbm [resolvable:$true] %s191
          %s193 = sshll.u32 %s181, 4
          %s194 = int_to_ptr.vmem [resolvable:$true] %s193
          %199 = dma.hbm_to_vmem [thread:$0]  %s192, 96, %s194, %s178, 32, 32, 2
        $region24: #{tpu_custom_call.1} parent=15 // pred_fallthru
          _
      $region16: #{tpu_custom_call.1} parent=5 // pred_fallthru
        _
      %p200 = scmp.le.s32.totalorder 1, %s14
      %p201 = scmp.lt.s32.totalorder %s14, 3
      %p202 = pnand %p200, %p201
      %p203 = pneg %p202
      // Predicated region
      $region25: #{tpu_custom_call.1} parent=5 // pred_check
        _
      $region26: #{tpu_custom_call.1} parent=5 // pred_check_branch
        %205 = sbr.rel (%p202) target = $region28
      $region27: #{tpu_custom_call.1} parent=5 // pred_region
        %s206 = ssub.s32 %s14, 1
        %s207 = sand.u32 %s54, 1
        %s208 = scalar_lea.sflag [#allocation6], %s207
        %s209 = sand.u32 %s54, 1
        %s210 = smul.addr %s209, 6
        %s211 = scalar_lea.vmem [#allocation5], %s210
        // Predicated region
        $region29: #{tpu_custom_call.1} parent=27 // pred_check
          %p212 = pneg %p67
        $region30: #{tpu_custom_call.1} parent=27 // pred_check_branch
          %214 = sbr.rel (%p212) target = $region32
        $region31: #{tpu_custom_call.1} parent=27 // pred_region
          %216 = dma.done %s208, 96
        $region32: #{tpu_custom_call.1} parent=27 // pred_fallthru
          _
        %s217 = sand.u32 %s88, 1
        %s218 = scalar_lea.sflag [#allocation8], %s217
        %s219 = sand.u32 %s88, 1
        %s220 = smul.addr %s219, 6
        %s221 = scalar_lea.vmem [#allocation7], %s220
        // Predicated region
        $region33: #{tpu_custom_call.1} parent=27 // pred_check
          %p222 = pneg %p101
        $region34: #{tpu_custom_call.1} parent=27 // pred_check_branch
          %224 = sbr.rel (%p222) target = $region36
        $region35: #{tpu_custom_call.1} parent=27 // pred_region
          %226 = dma.done %s218, 96
        $region36: #{tpu_custom_call.1} parent=27 // pred_fallthru
          _
        %s227 = sand.u32 %s54, 1
        %s228 = scalar_lea.sflag [#allocation6], %s227
        %s229 = sand.u32 %s54, 1
        %s230 = smul.addr %s229, 6
        %s231 = scalar_lea.vmem [#allocation5], %s230
        %p232 = pneg %p67
        %p233 = pneg %p64
        %s234 = sand.u32 %s88, 1
        %s235 = scalar_lea.sflag [#allocation8], %s234
        %s236 = sand.u32 %s88, 1
        %s237 = smul.addr %s236, 6
        %s238 = scalar_lea.vmem [#allocation7], %s237
        %p239 = pneg %p101
        %p240 = pneg %p98
        %p241 = pneg %p129
        %p242 = pneg %p126
        %p243 = scmp.lt.s32.totalorder %s24, 0
        %s244 = scalar_select %p243, %s24, 0
        %p245 = scmp.lt.s32.totalorder %s25, 1
        %s246 = scalar_select %p245, %s25, 1
        %s247 = smul.addr %s244, 2
        %s248 = sadd.s32 %s246, %s247
        %s249 = smul.addr %s248, 4
        %s250 = scalar_lea.vmem %s2, %s249
        %s251 = sadd.s32 %s24, %s26
        %p252 = scmp.lt.s32.totalorder %s251, 0
        %s253 = scalar_select %p252, %s251, 0
        %s254 = sadd.s32 %s24, %s26
        %p255 = scmp.lt.s32.totalorder %s254, 0
        %s256 = scalar_select %p255, %s254, 0
        %p257 = scmp.lt.s32.totalorder %s24, 0
        %s258 = scalar_select %p257, %s24, 0
        %p259 = scmp.lt.s32.totalorder %s25, 1
        %s260 = scalar_select %p259, %s25, 1
        %s261 = smul.addr %s258, 2
        %s262 = sadd.s32 %s260, %s261
        %s263 = smul.addr %s262, 4
        %s264 = scalar_lea.vmem %s2, %s263
        %s265 = sadd.s32 %s24, %s26
        %p266 = scmp.eq.s32.totalorder %s26, 0
        // Predicated region
        $region37: #{tpu_custom_call.1} parent=27 // pred_check
          %p267 = pneg %p266
        $region38: #{tpu_custom_call.1} parent=27 // pred_check_branch
          %269 = sbr.rel (%p267) target = $region40
        $region39: #{tpu_custom_call.1} parent=27 // pred_region
          %vm270 = vcmask 0
          %271 = vst.msk [vmem:[#allocation2] sm:$0x1] %vm270, 0.0
          %272 = vst.msk [vmem:[#allocation2 + $0x1] sm:$0x1] %vm270, 0.0
          %273 = vst.msk [vmem:[#allocation2 + $0x2] sm:$0x1] %vm270, 0.0
          %274 = vst.msk [vmem:[#allocation3] sm:$0x1] %vm270, 0.0
          %275 = vst.msk [vmem:[#allocation3 + $0x1] sm:$0x1] %vm270, 0.0
          %276 = vst.msk [vmem:[#allocation3 + $0x2] sm:$0x1] %vm270, 0.0
          %277 = vst.msk [vmem:[#allocation4] sm:$0x1] %vm270, 0.0
          %278 = vst.msk [vmem:[#allocation4 + $0x1] sm:$0x1] %vm270, 0.0
          %279 = vst.msk [vmem:[#allocation4 + $0x2] sm:$0x1] %vm270, 0.0
        $region40: #{tpu_custom_call.1} parent=27 // pred_fallthru
          _
        %v280 = vld [vmem:[%s211] sm:$0x3]
        %v281 = vld [vmem:[%s211 + $0x2] sm:$0x3]
        %v282 = vld [vmem:[%s211 + $0x4] sm:$0x3]
        %v283 = vld [vmem:[%s221] sm:$0x3]
        %v284 = vld [vmem:[%s221 + $0x2] sm:$0x3]
        %v285 = vld [vmem:[%s221 + $0x4] sm:$0x3]
        %vm286 = vcmp.gt.f32.partialorder %v283, 0.0
        %vm287 = vcmp.gt.f32.partialorder %v284, 0.0
        %vm288 = vcmp.gt.f32.partialorder %v285, 0.0
        %vm289 = vcmp.gt.f32.partialorder %v280, 0.5
        %vm290 = vcmp.gt.f32.partialorder %v281, 0.5
        %vm291 = vcmp.gt.f32.partialorder %v282, 0.5
        %p292 = scmp.ge.s32.totalorder %s265, 0
        %p293 = scmp.lt.s32.totalorder %s265, 0
        // Predicated region
        $region41: #{tpu_custom_call.1} parent=27 // pred_check
          %p294 = pneg %p293
        $region42: #{tpu_custom_call.1} parent=27 // pred_check_branch
          %296 = sbr.rel (%p294) target = $region44
        $region43: #{tpu_custom_call.1} parent=27 // pred_region
          %v297 = vld [vmem:[#allocation2] sm:$0x1]
          %v298 = vld [vmem:[#allocation2 + $0x1] sm:$0x1]
          %v299 = vld [vmem:[#allocation2 + $0x2] sm:$0x1]
          %vm300 = vmand %vm289, %vm286
          %vm301 = vmand %vm290, %vm287
          %vm302 = vmand %vm291, %vm288
          %v303 = vsel %vm300, 1, 0
          %v304 = vsel %vm301, 1, 0
          %v305 = vsel %vm302, 1, 0
          %v306 = vcvt.s32.f32 %v303
          %v307 = vcvt.s32.f32 %v304
          %v308 = vcvt.s32.f32 %v305
          %vm309 = vcmask 1041408
          %v310 = vsel %vm309, %v306, 0.0
          %v311 = vrot.slane %v310, 4
          %v312 = vadd.f32 %v310, %v311
          %v313 = vrot.slane %v312, 2
          %v314 = vadd.f32 %v312, %v313
          %v315 = vrot.slane %v314, 1
          %v316 = vadd.f32 %v314, %v315
          %v317 = vsel %vm309, %v307, 0.0
          %v318 = vrot.slane %v317, 4
          %v319 = vadd.f32 %v317, %v318
          %v320 = vrot.slane %v319, 2
          %v321 = vadd.f32 %v319, %v320
          %v322 = vrot.slane %v321, 1
          %v323 = vadd.f32 %v321, %v322
          %v324 = vsel %vm309, %v308, 0.0
          %v325 = vrot.slane %v324, 4
          %v326 = vadd.f32 %v324, %v325
          %v327 = vrot.slane %v326, 2
          %v328 = vadd.f32 %v326, %v327
          %v329 = vrot.slane %v328, 1
          %v330 = vadd.f32 %v328, %v329
          %331 = vadd.xlane.f32.xlu0 %v316
          %v332 = vpop.xlane.xlu0 %331
          %333 = vadd.xlane.f32.xlu0 %v323
          %v334 = vpop.xlane.xlu0 %333
          %335 = vadd.xlane.f32.xlu0 %v330
          %v336 = vpop.xlane.xlu0 %335
          %v337 = vadd.f32 %v297, %v332
          %v338 = vadd.f32 %v298, %v334
          %v339 = vadd.f32 %v299, %v336
          %vm340 = vcmask 0
          %341 = vst.msk [vmem:[#allocation2] sm:$0x1] %vm340, %v337
          %342 = vst.msk [vmem:[#allocation2 + $0x1] sm:$0x1] %vm340, %v338
          %343 = vst.msk [vmem:[#allocation2 + $0x2] sm:$0x1] %vm340, %v339
          %v344 = vld [vmem:[#allocation3] sm:$0x1]
          %v345 = vld [vmem:[#allocation3 + $0x1] sm:$0x1]
          %v346 = vld [vmem:[#allocation3 + $0x2] sm:$0x1]
          %v347 = vsel %vm289, 1, 0
          %v348 = vsel %vm290, 1, 0
          %v349 = vsel %vm291, 1, 0
          %v350 = vcvt.s32.f32 %v347
          %v351 = vcvt.s32.f32 %v348
          %v352 = vcvt.s32.f32 %v349
          %v353 = vsel %vm309, %v350, 0.0
          %v354 = vrot.slane %v353, 4
          %v355 = vadd.f32 %v353, %v354
          %v356 = vrot.slane %v355, 2
          %v357 = vadd.f32 %v355, %v356
          %v358 = vrot.slane %v357, 1
          %v359 = vadd.f32 %v357, %v358
          %v360 = vsel %vm309, %v351, 0.0
          %v361 = vrot.slane %v360, 4
          %v362 = vadd.f32 %v360, %v361
          %v363 = vrot.slane %v362, 2
          %v364 = vadd.f32 %v362, %v363
          %v365 = vrot.slane %v364, 1
          %v366 = vadd.f32 %v364, %v365
          %v367 = vsel %vm309, %v352, 0.0
          %v368 = vrot.slane %v367, 4
          %v369 = vadd.f32 %v367, %v368
          %v370 = vrot.slane %v369, 2
          %v371 = vadd.f32 %v369, %v370
          %v372 = vrot.slane %v371, 1
          %v373 = vadd.f32 %v371, %v372
          %374 = vadd.xlane.f32.xlu0 %v359
          %v375 = vpop.xlane.xlu0 %374
          %376 = vadd.xlane.f32.xlu0 %v366
          %v377 = vpop.xlane.xlu0 %376
          %378 = vadd.xlane.f32.xlu0 %v373
          %v379 = vpop.xlane.xlu0 %378
          %v380 = vadd.f32 %v344, %v375
          %v381 = vadd.f32 %v345, %v377
          %v382 = vadd.f32 %v346, %v379
          %383 = vst.msk [vmem:[#allocation3] sm:$0x1] %vm340, %v380
          %384 = vst.msk [vmem:[#allocation3 + $0x1] sm:$0x1] %vm340, %v381
          %385 = vst.msk [vmem:[#allocation3 + $0x2] sm:$0x1] %vm340, %v382
          %v386 = vld [vmem:[#allocation4] sm:$0x1]
          %v387 = vld [vmem:[#allocation4 + $0x1] sm:$0x1]
          %v388 = vld [vmem:[#allocation4 + $0x2] sm:$0x1]
          %v389 = vsel %vm286, 1, 0
          %v390 = vsel %vm287, 1, 0
          %v391 = vsel %vm288, 1, 0
          %v392 = vcvt.s32.f32 %v389
          %v393 = vcvt.s32.f32 %v390
          %v394 = vcvt.s32.f32 %v391
          %v395 = vsel %vm309, %v392, 0.0
          %v396 = vrot.slane %v395, 4
          %v397 = vadd.f32 %v395, %v396
          %v398 = vrot.slane %v397, 2
          %v399 = vadd.f32 %v397, %v398
          %v400 = vrot.slane %v399, 1
          %v401 = vadd.f32 %v399, %v400
          %v402 = vsel %vm309, %v393, 0.0
          %v403 = vrot.slane %v402, 4
          %v404 = vadd.f32 %v402, %v403
          %v405 = vrot.slane %v404, 2
          %v406 = vadd.f32 %v404, %v405
          %v407 = vrot.slane %v406, 1
          %v408 = vadd.f32 %v406, %v407
          %v409 = vsel %vm309, %v394, 0.0
          %v410 = vrot.slane %v409, 4
          %v411 = vadd.f32 %v409, %v410
          %v412 = vrot.slane %v411, 2
          %v413 = vadd.f32 %v411, %v412
          %v414 = vrot.slane %v413, 1
          %v415 = vadd.f32 %v413, %v414
          %416 = vadd.xlane.f32.xlu0 %v401
          %v417 = vpop.xlane.xlu0 %416
          %418 = vadd.xlane.f32.xlu0 %v408
          %v419 = vpop.xlane.xlu0 %418
          %420 = vadd.xlane.f32.xlu0 %v415
          %v421 = vpop.xlane.xlu0 %420
          %v422 = vadd.f32 %v386, %v417
          %v423 = vadd.f32 %v387, %v419
          %v424 = vadd.f32 %v388, %v421
          %425 = vst.msk [vmem:[#allocation4] sm:$0x1] %vm340, %v422
          %426 = vst.msk [vmem:[#allocation4 + $0x1] sm:$0x1] %vm340, %v423
          %427 = vst.msk [vmem:[#allocation4 + $0x2] sm:$0x1] %vm340, %v424
        $region44: #{tpu_custom_call.1} parent=27 // pred_fallthru
          _
        // Predicated region
        $region45: #{tpu_custom_call.1} parent=27 // pred_check
          %p428 = pneg %p292
        $region46: #{tpu_custom_call.1} parent=27 // pred_check_branch
          %430 = sbr.rel (%p428) target = $region48
        $region47: #{tpu_custom_call.1} parent=27 // pred_region
          %v431 = vlaneseq
          %v432 = vshrl.u32 %v431, 7
          %v433 = vlaneseq
          %v434 = vand.u32 %v433, 127
          %v435 = vmul.u32 %v432, 128
          %v436 = vadd.s32 %v435, %v434
          %s437 = smul.u32 %s265, 256
          %v438 = vstv %s437
          %v439 = vadd.s32 %v438, %v436
          %vm440 = vcmp.lt.s32.totalorder %v439, 256
          %v441 = vsel %vm440, 1, 0
          %vm442 = vcmp.eq.s32.totalorder %v441, 1
          %vm443 = vmand %vm289, %vm442
          %vm444 = vmand %vm290, %vm442
          %vm445 = vmand %vm291, %vm442
          %vm446 = vmand %vm286, %vm442
          %vm447 = vmand %vm287, %vm442
          %vm448 = vmand %vm288, %vm442
          %v449 = vld [vmem:[#allocation2] sm:$0x1]
          %v450 = vld [vmem:[#allocation2 + $0x1] sm:$0x1]
          %v451 = vld [vmem:[#allocation2 + $0x2] sm:$0x1]
          %vm452 = vmand %vm443, %vm446
          %vm453 = vmand %vm444, %vm447
          %vm454 = vmand %vm445, %vm448
          %v455 = vsel %vm452, 1, 0
          %v456 = vsel %vm453, 1, 0
          %v457 = vsel %vm454, 1, 0
          %v458 = vcvt.s32.f32 %v455
          %v459 = vcvt.s32.f32 %v456
          %v460 = vcvt.s32.f32 %v457
          %vm461 = vcmask 1041408
          %v462 = vsel %vm461, %v458, 0.0
          %v463 = vrot.slane %v462, 4
          %v464 = vadd.f32 %v462, %v463
          %v465 = vrot.slane %v464, 2
          %v466 = vadd.f32 %v464, %v465
          %v467 = vrot.slane %v466, 1
          %v468 = vadd.f32 %v466, %v467
          %v469 = vsel %vm461, %v459, 0.0
          %v470 = vrot.slane %v469, 4
          %v471 = vadd.f32 %v469, %v470
          %v472 = vrot.slane %v471, 2
          %v473 = vadd.f32 %v471, %v472
          %v474 = vrot.slane %v473, 1
          %v475 = vadd.f32 %v473, %v474
          %v476 = vsel %vm461, %v460, 0.0
          %v477 = vrot.slane %v476, 4
          %v478 = vadd.f32 %v476, %v477
          %v479 = vrot.slane %v478, 2
          %v480 = vadd.f32 %v478, %v479
          %v481 = vrot.slane %v480, 1
          %v482 = vadd.f32 %v480, %v481
          %483 = vadd.xlane.f32.xlu0 %v468
          %v484 = vpop.xlane.xlu0 %483
          %485 = vadd.xlane.f32.xlu0 %v475
          %v486 = vpop.xlane.xlu0 %485
          %487 = vadd.xlane.f32.xlu0 %v482
          %v488 = vpop.xlane.xlu0 %487
          %v489 = vadd.f32 %v449, %v484
          %v490 = vadd.f32 %v450, %v486
          %v491 = vadd.f32 %v451, %v488
          %vm492 = vcmask 0
          %493 = vst.msk [vmem:[#allocation2] sm:$0x1] %vm492, %v489
          %494 = vst.msk [vmem:[#allocation2 + $0x1] sm:$0x1] %vm492, %v490
          %495 = vst.msk [vmem:[#allocation2 + $0x2] sm:$0x1] %vm492, %v491
          %v496 = vld [vmem:[#allocation3] sm:$0x1]
          %v497 = vld [vmem:[#allocation3 + $0x1] sm:$0x1]
          %v498 = vld [vmem:[#allocation3 + $0x2] sm:$0x1]
          %v499 = vsel %vm443, 1, 0
          %v500 = vsel %vm444, 1, 0
          %v501 = vsel %vm445, 1, 0
          %v502 = vcvt.s32.f32 %v499
          %v503 = vcvt.s32.f32 %v500
          %v504 = vcvt.s32.f32 %v501
          %v505 = vsel %vm461, %v502, 0.0
          %v506 = vrot.slane %v505, 4
          %v507 = vadd.f32 %v505, %v506
          %v508 = vrot.slane %v507, 2
          %v509 = vadd.f32 %v507, %v508
          %v510 = vrot.slane %v509, 1
          %v511 = vadd.f32 %v509, %v510
          %v512 = vsel %vm461, %v503, 0.0
          %v513 = vrot.slane %v512, 4
          %v514 = vadd.f32 %v512, %v513
          %v515 = vrot.slane %v514, 2
          %v516 = vadd.f32 %v514, %v515
          %v517 = vrot.slane %v516, 1
          %v518 = vadd.f32 %v516, %v517
          %v519 = vsel %vm461, %v504, 0.0
          %v520 = vrot.slane %v519, 4
          %v521 = vadd.f32 %v519, %v520
          %v522 = vrot.slane %v521, 2
          %v523 = vadd.f32 %v521, %v522
          %v524 = vrot.slane %v523, 1
          %v525 = vadd.f32 %v523, %v524
          %526 = vadd.xlane.f32.xlu0 %v511
          %v527 = vpop.xlane.xlu0 %526
          %528 = vadd.xlane.f32.xlu0 %v518
          %v529 = vpop.xlane.xlu0 %528
          %530 = vadd.xlane.f32.xlu0 %v525
          %v531 = vpop.xlane.xlu0 %530
          %v532 = vadd.f32 %v496, %v527
          %v533 = vadd.f32 %v497, %v529
          %v534 = vadd.f32 %v498, %v531
          %535 = vst.msk [vmem:[#allocation3] sm:$0x1] %vm492, %v532
          %536 = vst.msk [vmem:[#allocation3 + $0x1] sm:$0x1] %vm492, %v533
          %537 = vst.msk [vmem:[#allocation3 + $0x2] sm:$0x1] %vm492, %v534
          %v538 = vld [vmem:[#allocation4] sm:$0x1]
          %v539 = vld [vmem:[#allocation4 + $0x1] sm:$0x1]
          %v540 = vld [vmem:[#allocation4 + $0x2] sm:$0x1]
          %v541 = vsel %vm446, 1, 0
          %v542 = vsel %vm447, 1, 0
          %v543 = vsel %vm448, 1, 0
          %v544 = vcvt.s32.f32 %v541
          %v545 = vcvt.s32.f32 %v542
          %v546 = vcvt.s32.f32 %v543
          %v547 = vsel %vm461, %v544, 0.0
          %v548 = vrot.slane %v547, 4
          %v549 = vadd.f32 %v547, %v548
          %v550 = vrot.slane %v549, 2
          %v551 = vadd.f32 %v549, %v550
          %v552 = vrot.slane %v551, 1
          %v553 = vadd.f32 %v551, %v552
          %v554 = vsel %vm461, %v545, 0.0
          %v555 = vrot.slane %v554, 4
          %v556 = vadd.f32 %v554, %v555
          %v557 = vrot.slane %v556, 2
          %v558 = vadd.f32 %v556, %v557
          %v559 = vrot.slane %v558, 1
          %v560 = vadd.f32 %v558, %v559
          %v561 = vsel %vm461, %v546, 0.0
          %v562 = vrot.slane %v561, 4
          %v563 = vadd.f32 %v561, %v562
          %v564 = vrot.slane %v563, 2
          %v565 = vadd.f32 %v563, %v564
          %v566 = vrot.slane %v565, 1
          %v567 = vadd.f32 %v565, %v566
          %568 = vadd.xlane.f32.xlu0 %v553
          %v569 = vpop.xlane.xlu0 %568
          %570 = vadd.xlane.f32.xlu0 %v560
          %v571 = vpop.xlane.xlu0 %570
          %572 = vadd.xlane.f32.xlu0 %v567
          %v573 = vpop.xlane.xlu0 %572
          %v574 = vadd.f32 %v538, %v569
          %v575 = vadd.f32 %v539, %v571
          %v576 = vadd.f32 %v540, %v573
          %577 = vst.msk [vmem:[#allocation4] sm:$0x1] %vm492, %v574
          %578 = vst.msk [vmem:[#allocation4 + $0x1] sm:$0x1] %vm492, %v575
          %579 = vst.msk [vmem:[#allocation4 + $0x2] sm:$0x1] %vm492, %v576
        $region48: #{tpu_custom_call.1} parent=27 // pred_fallthru
          _
        // Predicated region
        $region49: #{tpu_custom_call.1} parent=27 // pred_check
          %p580 = pneg %p266
        $region50: #{tpu_custom_call.1} parent=27 // pred_check_branch
          %582 = sbr.rel (%p580) target = $region52
        $region51: #{tpu_custom_call.1} parent=27 // pred_region
          %v583 = vld [vmem:[#allocation2] sm:$0x1]
          %v584 = vld [vmem:[#allocation2 + $0x1] sm:$0x1]
          %v585 = vld [vmem:[#allocation2 + $0x2] sm:$0x1]
          %v586 = vadd.f32 %v583, 0.0
          %v587 = vadd.f32 %v584, 0.0
          %v588 = vadd.f32 %v585, 0.0
          %v589 = vadd.f32 %v586, 0.0
          %v590 = vadd.f32 %v587, 0.0
          %v591 = vadd.f32 %v588, 0.0
          %v592 = vld [vmem:[#allocation3] sm:$0x1]
          %v593 = vld [vmem:[#allocation3 + $0x1] sm:$0x1]
          %v594 = vld [vmem:[#allocation3 + $0x2] sm:$0x1]
          %v595 = vadd.f32 %v592, 0.0
          %v596 = vadd.f32 %v593, 0.0
          %v597 = vadd.f32 %v594, 0.0
          %v598 = vadd.f32 %v595, 0.0
          %v599 = vadd.f32 %v596, 0.0
          %v600 = vadd.f32 %v597, 0.0
          %v601 = vld [vmem:[#allocation4] sm:$0x1]
          %v602 = vld [vmem:[#allocation4 + $0x1] sm:$0x1]
          %v603 = vld [vmem:[#allocation4 + $0x2] sm:$0x1]
          %v604 = vadd.f32 %v601, 0.0
          %v605 = vadd.f32 %v602, 0.0
          %v606 = vadd.f32 %v603, 0.0
          %v607 = vadd.f32 %v604, 0.0
          %v608 = vadd.f32 %v605, 0.0
          %v609 = vadd.f32 %v606, 0.0
          %613 = vst [vmem:[#allocation1] ss:$9 sm:$0xff] %v589
          %s614 = scalar_lea.vmem [#allocation1], 1
          %615 = vst [vmem:[%s614] ss:$9 sm:$0xff] %v590
          %s616 = scalar_lea.vmem [#allocation1], 2
          %617 = vst [vmem:[%s616] ss:$9 sm:$0xff] %v591
          %v618 = vld [vmem:[#allocation1] sm:$0xff]
          %623 = vst [vmem:[#allocation1] ss:$9 sm:$0xff] %v598
          %s624 = scalar_lea.vmem [#allocation1], 1
          %625 = vst [vmem:[%s624] ss:$9 sm:$0xff] %v599
          %s626 = scalar_lea.vmem [#allocation1], 2
          %627 = vst [vmem:[%s626] ss:$9 sm:$0xff] %v600
          %v628 = vld [vmem:[#allocation1] sm:$0xff]
          %629 = vrot.lane.b32.xlu0 %v628, 1
          %v630 = vpop.permute.xlu0 %629
          %635 = vst [vmem:[#allocation1] ss:$9 sm:$0xff] %v607
          %s636 = scalar_lea.vmem [#allocation1], 1
          %637 = vst [vmem:[%s636] ss:$9 sm:$0xff] %v608
          %s638 = scalar_lea.vmem [#allocation1], 2
          %639 = vst [vmem:[%s638] ss:$9 sm:$0xff] %v609
          %v640 = vld [vmem:[#allocation1] sm:$0xff]
          %641 = vrot.lane.b32.xlu0 %v640, 2
          %v642 = vpop.permute.xlu0 %641
          %vm644 = vcmask 7168
          %v645 = vsel %vm644, %v618, %v630
          %vm646 = vcmask 15360
          %v647 = vsel %vm646, %v645, %v642
          %vm648 = vcmask 18432
          %649 = vst.msk [vmem:[%s264] sm:$0x7] %vm648, %v647
        $region52: #{tpu_custom_call.1} parent=27 // pred_fallthru
          _
        %p650 = scmp.lt.s32.totalorder %s24, 0
        %s651 = scalar_select %p650, %s24, 0
        %p652 = scmp.lt.s32.totalorder %s25, 1
        %s653 = scalar_select %p652, %s25, 1
        %s654 = smul.addr %s651, 2
        %s655 = sadd.s32 %s653, %s654
        %s656 = smul.addr %s655, 4
        %s657 = scalar_lea.vmem %s2, %s656
        // Predicated region
        $region53: #{tpu_custom_call.1} parent=27 // pred_check
          %p658 = pneg %p126
        $region54: #{tpu_custom_call.1} parent=27 // pred_check_branch
          %660 = sbr.rel (%p658) target = $region56
        $region55: #{tpu_custom_call.1} parent=27 // pred_region
          _
        $region56: #{tpu_custom_call.1} parent=27 // pred_fallthru
          _
      $region28: #{tpu_custom_call.1} parent=5 // pred_fallthru
        _
      %p661 = scmp.le.s32.totalorder 2, %s14
      // Predicated region
      $region57: #{tpu_custom_call.1} parent=5 // pred_check
        %p662 = pneg %p661
      $region58: #{tpu_custom_call.1} parent=5 // pred_check_branch
        %664 = sbr.rel (%p662) target = $region60
      $region59: #{tpu_custom_call.1} parent=5 // pred_region
        %s665 = ssub.s32 %s14, 2
        // Predicated region
        $region61: #{tpu_custom_call.1} parent=59 // pred_check
          %p666 = pneg %p132
        $region62: #{tpu_custom_call.1} parent=59 // pred_check_branch
          %668 = sbr.rel (%p666) target = $region64
        $region63: #{tpu_custom_call.1} parent=59 // pred_region
          %p669 = scmp.lt.s32.totalorder %s27, 0
          %s670 = scalar_select %p669, %s27, 0
          %p671 = scmp.lt.s32.totalorder %s28, 1
          %s672 = scalar_select %p671, %s28, 1
          %s673 = smul.addr %s670, 2
          %s674 = sadd.s32 %s672, %s673
          %s675 = smul.addr %s674, 4
          %s676 = scalar_lea.vmem %s2, %s675
        $region64: #{tpu_custom_call.1} parent=59 // pred_fallthru
          _
      $region60: #{tpu_custom_call.1} parent=5 // pred_fallthru
        _
    $region6: #{tpu_custom_call.1} parent=1 // loop_footer
      %s18 = sadd.s32 1, %s14
    $region7: #{tpu_custom_call.1} parent=1 // loop_footer_branch
      %13 = sbr.rel target = $region3
    $region8: #{tpu_custom_call.1} parent=1 // loop_exit
      _
    %677 = vsyncpa [#allocation6], 1
    %s678 = scalar_lea.sflag [#allocation6], 1
    %679 = vsyncpa %s678, 1
    %680 = vsyncpa [#allocation8], 1
    %s681 = scalar_lea.sflag [#allocation8], 1
    %682 = vsyncpa %s681, 1

</llo_original>
